<compile_context>
chip_gen: v7x
topology: tpu7x:2x2x1
jax: 0.10.0
libtpu: 0.0.40
codegen_flags: <defaults>
</compile_context>

<pallas_src>
import jax
import jax.numpy as jnp
import numpy as np
from jax import lax
from jax.experimental import pallas as pl
from jax.experimental.pallas import tpu as pltpu

DELTA = 0.5
LANES = 128          # batch elements per lane row
CH = 8               # rows per inner-loop chunk -> one (8,128) vreg tile
N_BOT = 7
QUANT_AFTER_LAYER = 2  # quantize after the 3rd (last encoder) layer

# network layout: (fan_in, fan_out) per Linear, encoder then decoder
DIMS = ((1, 3), (3, 5), (5, 7), (7, 5), (5, 3), (3, 1))

# static offsets of each layer inside the packed parameter vector
_OFFS = []
_off = 0
for _fi, _fo in DIMS:
    _OFFS.append(_off)
    _off += _fi * _fo + _fo
PARAM_COUNT = _off  # = 130


def quantizer_kernel(p_ref, x_ref, y_ref, q_ref):
    """p_ref: (130,) f32 in SMEM.  x_ref/y_ref: (TR,128).  q_ref: (7,TR,128)."""
    tr = x_ref.shape[0]
    n_chunks = tr // CH

    def body(c, carry):
        r0 = pl.multiple_of(c * CH, CH)
        acts = [x_ref[pl.ds(r0, CH), :]]               # list of (CH,128) vregs

        for li, (fi, fo) in enumerate(DIMS):
            w_off = _OFFS[li]
            b_off = w_off + fi * fo
            outs = []
            for j in range(fo):
                # bias + sum_i acts[i] * w[i, j]   (scalar-broadcast VPU FMAs)
                s = acts[0] * p_ref[w_off + j] + p_ref[b_off + j]
                for i in range(1, fi):
                    s = s + acts[i] * p_ref[w_off + i * fo + j]
                if li != len(DIMS) - 1:                # no ReLU on final layer
                    s = jnp.maximum(s, 0.0)
                outs.append(s)
            acts = outs

            if li == QUANT_AFTER_LAYER:
                # uniform quantizer (eval path): delta * round(x / delta)
                acts = [jnp.round(a * (1.0 / DELTA)) * DELTA for a in acts]
                for m in range(N_BOT):
                    q_ref[m, pl.ds(r0, CH), :] = acts[m]

        y_ref[pl.ds(r0, CH), :] = acts[0]
        return carry

    lax.fori_loop(0, n_chunks, body, 0)


def init_params(key):
    """Deterministic PyTorch-Linear-style init; weights stored (in, out)."""
    layers = []
    for (fan_in, fan_out) in DIMS:
        key, kw, kb = jax.random.split(key, 3)
        bound = 1.0 / np.sqrt(fan_in)
        w = jax.random.uniform(kw, (fan_in, fan_out), jnp.float32, -bound, bound)
        b = jax.random.uniform(kb, (fan_out,), jnp.float32, -bound, bound)
        layers.append((w, b))
    return layers


def pack_params(layers):
    """Pack all weights/biases into one flat (130,) f32 vector (kernel order)."""
    parts = []
    for (w, b) in layers:
        parts.append(w.reshape(-1))   # row-major: w[i, j] at i*fan_out + j
        parts.append(b.reshape(-1))
    return jnp.concatenate(parts).astype(jnp.float32)


def quantizer_gaussian_forward(x, params, rows_per_block=512):
    """x: (B, 1) float32, params: packed (130,) float32.
    Returns (output (B, 1), quantized (B, 7))."""
    B = x.shape[0]
    flat = x.reshape(-1).astype(jnp.float32)

    rows_per_block = max(CH, (rows_per_block // CH) * CH)
    r_needed = -(-B // LANES)
    if r_needed <= rows_per_block:
        tr = -(-r_needed // CH) * CH        # single grid step
        r_pad = tr
    else:
        tr = rows_per_block
        r_pad = -(-r_needed // tr) * tr
    total = r_pad * LANES
    if total != B:                          # tiny tail pad only (real-data sized)
        flat = jnp.pad(flat, (0, total - B))
    x2d = flat.reshape(r_pad, LANES)

    y2d, q3d = pl.pallas_call(
        quantizer_kernel,
        out_shape=(jax.ShapeDtypeStruct((r_pad, LANES), jnp.float32),
                   jax.ShapeDtypeStruct((N_BOT, r_pad, LANES), jnp.float32)),
        grid=(r_pad // tr,),
        in_specs=[
            pl.BlockSpec(memory_space=pltpu.MemorySpace.SMEM),   # packed params
            pl.BlockSpec((tr, LANES), lambda i: (i, 0)),          # x tile
        ],
        out_specs=(
            pl.BlockSpec((tr, LANES), lambda i: (i, 0)),          # y tile
            pl.BlockSpec((N_BOT, tr, LANES), lambda i: (0, i, 0)),  # q tile
        ),
        compiler_params=pltpu.CompilerParams(
            dimension_semantics=("parallel",)),
    )(params, x2d)

    y = y2d.reshape(-1)[:B].reshape(B, 1)
    q = q3d.reshape(N_BOT, -1)[:, :B].T
    return y, q


def ref_forward(x, layers):
    """Pure-JAX reference (nn.Linear semantics, same accumulation order)."""
    def linear(h, w, b):
        fi, fo = w.shape
        cols = []
        for j in range(fo):
            s = h[:, 0] * w[0, j] + b[j]
            for i in range(1, fi):
                s = s + h[:, i] * w[i, j]
            cols.append(s)
        return jnp.stack(cols, axis=1)

    h = jax.nn.relu(linear(x, *layers[0]))
    h = jax.nn.relu(linear(h, *layers[1]))
    f = jax.nn.relu(linear(h, *layers[2]))
    q = jnp.round(f / DELTA) * DELTA
    d = jax.nn.relu(linear(q, *layers[3]))
    d = jax.nn.relu(linear(d, *layers[4]))
    y = linear(d, *layers[5])
    return y, q


if __name__ == "__main__":
    key = jax.random.PRNGKey(0)
    k_params, k_x = jax.random.split(key)
    layers = init_params(k_params)
    params = pack_params(layers)

    B = 2048
    x = jax.random.normal(k_x, (B, 1), dtype=jnp.float32)

    y_ref, q_ref_ = ref_forward(x, layers)

    # single grid step (default tiling)
    out, quantized = quantizer_gaussian_forward(x, params)
    out, quantized = jax.block_until_ready((out, quantized))
    np.testing.assert_allclose(np.asarray(out), np.asarray(y_ref), rtol=1e-5, atol=1e-5)
    np.testing.assert_allclose(np.asarray(quantized), np.asarray(q_ref_), rtol=1e-5, atol=1e-5)

    # multi-step grid (exercises pipelining / megacore split on v7x)
    out2, quant2 = quantizer_gaussian_forward(x, params, rows_per_block=8)
    out2, quant2 = jax.block_until_ready((out2, quant2))
    np.testing.assert_allclose(np.asarray(out2), np.asarray(y_ref), rtol=1e-5, atol=1e-5)
    np.testing.assert_allclose(np.asarray(quant2), np.asarray(q_ref_), rtol=1e-5, atol=1e-5)

    print("KERNEL_OK")
</pallas_src>

<mosaic_0001>
module attributes {stable_mosaic.version = 11 : i64} {
  func.func @quantizer_kernel(%arg0: i32, %arg1: memref<130xf32, #tpu.memory_space<smem>>, %arg2: memref<16x128xf32, #tpu.memory_space<vmem>>, %arg3: memref<16x128xf32, #tpu.memory_space<vmem>>, %arg4: memref<7x16x128xf32, #tpu.memory_space<vmem>>) attributes {dimension_semantics = [#tpu.dimension_semantics<parallel>], iteration_bounds = array<i64: 1>, scalar_prefetch = 0 : i64, scratch_operands = 0 : i64, tpu.core_type = #tpu.core_type<tc>, window_params = [{transform_indices = @transform_0, window_bounds = array<i64: 130>}, {transform_indices = @transform_1, window_bounds = array<i64: 16, 128>}, {transform_indices = @transform_2, window_bounds = array<i64: 16, 128>}, {transform_indices = @transform_3, window_bounds = array<i64: 7, 16, 128>}]} {
    %c0_i32 = arith.constant 0 : i32
    %c2_i32 = arith.constant 2 : i32
    %0 = arith.addi %c0_i32, %c2_i32 : i32
    %c1_i32 = arith.constant 1 : i32
    scf.for %arg5 = %c0_i32 to %0 step %c1_i32  : i32 {
      %c8_i32 = arith.constant 8 : i32
      %1 = arith.muli %arg5, %c8_i32 : i32
      %2 = tpu.assume_multiple %1, 8 : i32
      %3 = arith.index_cast %2 : i32 to index
      %c0 = arith.constant 0 : index
      %4 = vector.load %arg2[%3, %c0] : memref<16x128xf32, #tpu.memory_space<vmem>>, vector<8x128xf32>
      %c0_1 = arith.constant 0 : index
      %5 = memref.load %arg1[%c0_1] : memref<130xf32, #tpu.memory_space<smem>>
      %6 = vector.broadcast %5 : f32 to vector<8x128xf32>
      %7 = arith.mulf %4, %6 : vector<8x128xf32>
      %c3 = arith.constant 3 : index
      %8 = memref.load %arg1[%c3] : memref<130xf32, #tpu.memory_space<smem>>
      %9 = vector.broadcast %8 : f32 to vector<8x128xf32>
      %10 = arith.addf %7, %9 : vector<8x128xf32>
      %cst = arith.constant 0.000000e+00 : f32
      %11 = vector.broadcast %cst : f32 to vector<8x128xf32>
      %12 = arith.maximumf %10, %11 : vector<8x128xf32>
      %c1 = arith.constant 1 : index
      %13 = memref.load %arg1[%c1] : memref<130xf32, #tpu.memory_space<smem>>
      %14 = vector.broadcast %13 : f32 to vector<8x128xf32>
      %15 = arith.mulf %4, %14 : vector<8x128xf32>
      %c4 = arith.constant 4 : index
      %16 = memref.load %arg1[%c4] : memref<130xf32, #tpu.memory_space<smem>>
      %17 = vector.broadcast %16 : f32 to vector<8x128xf32>
      %18 = arith.addf %15, %17 : vector<8x128xf32>
      %cst_2 = arith.constant 0.000000e+00 : f32
      %19 = vector.broadcast %cst_2 : f32 to vector<8x128xf32>
      %20 = arith.maximumf %18, %19 : vector<8x128xf32>
      %c2 = arith.constant 2 : index
      %21 = memref.load %arg1[%c2] : memref<130xf32, #tpu.memory_space<smem>>
      %22 = vector.broadcast %21 : f32 to vector<8x128xf32>
      %23 = arith.mulf %4, %22 : vector<8x128xf32>
      %c5 = arith.constant 5 : index
      %24 = memref.load %arg1[%c5] : memref<130xf32, #tpu.memory_space<smem>>
      %25 = vector.broadcast %24 : f32 to vector<8x128xf32>
      %26 = arith.addf %23, %25 : vector<8x128xf32>
      %cst_3 = arith.constant 0.000000e+00 : f32
      %27 = vector.broadcast %cst_3 : f32 to vector<8x128xf32>
      %28 = arith.maximumf %26, %27 : vector<8x128xf32>
      %c6 = arith.constant 6 : index
      %29 = memref.load %arg1[%c6] : memref<130xf32, #tpu.memory_space<smem>>
      %30 = vector.broadcast %29 : f32 to vector<8x128xf32>
      %31 = arith.mulf %12, %30 : vector<8x128xf32>
      %c21 = arith.constant 21 : index
      %32 = memref.load %arg1[%c21] : memref<130xf32, #tpu.memory_space<smem>>
      %33 = vector.broadcast %32 : f32 to vector<8x128xf32>
      %34 = arith.addf %31, %33 : vector<8x128xf32>
      %c11 = arith.constant 11 : index
      %35 = memref.load %arg1[%c11] : memref<130xf32, #tpu.memory_space<smem>>
      %36 = vector.broadcast %35 : f32 to vector<8x128xf32>
      %37 = arith.mulf %20, %36 : vector<8x128xf32>
      %38 = arith.addf %34, %37 : vector<8x128xf32>
      %c16 = arith.constant 16 : index
      %39 = memref.load %arg1[%c16] : memref<130xf32, #tpu.memory_space<smem>>
      %40 = vector.broadcast %39 : f32 to vector<8x128xf32>
      %41 = arith.mulf %28, %40 : vector<8x128xf32>
      %42 = arith.addf %38, %41 : vector<8x128xf32>
      %cst_4 = arith.constant 0.000000e+00 : f32
      %43 = vector.broadcast %cst_4 : f32 to vector<8x128xf32>
      %44 = arith.maximumf %42, %43 : vector<8x128xf32>
      %c7 = arith.constant 7 : index
      %45 = memref.load %arg1[%c7] : memref<130xf32, #tpu.memory_space<smem>>
      %46 = vector.broadcast %45 : f32 to vector<8x128xf32>
      %47 = arith.mulf %12, %46 : vector<8x128xf32>
      %c22 = arith.constant 22 : index
      %48 = memref.load %arg1[%c22] : memref<130xf32, #tpu.memory_space<smem>>
      %49 = vector.broadcast %48 : f32 to vector<8x128xf32>
      %50 = arith.addf %47, %49 : vector<8x128xf32>
      %c12 = arith.constant 12 : index
      %51 = memref.load %arg1[%c12] : memref<130xf32, #tpu.memory_space<smem>>
      %52 = vector.broadcast %51 : f32 to vector<8x128xf32>
      %53 = arith.mulf %20, %52 : vector<8x128xf32>
      %54 = arith.addf %50, %53 : vector<8x128xf32>
      %c17 = arith.constant 17 : index
      %55 = memref.load %arg1[%c17] : memref<130xf32, #tpu.memory_space<smem>>
      %56 = vector.broadcast %55 : f32 to vector<8x128xf32>
      %57 = arith.mulf %28, %56 : vector<8x128xf32>
      %58 = arith.addf %54, %57 : vector<8x128xf32>
      %cst_5 = arith.constant 0.000000e+00 : f32
      %59 = vector.broadcast %cst_5 : f32 to vector<8x128xf32>
      %60 = arith.maximumf %58, %59 : vector<8x128xf32>
      %c8 = arith.constant 8 : index
      %61 = memref.load %arg1[%c8] : memref<130xf32, #tpu.memory_space<smem>>
      %62 = vector.broadcast %61 : f32 to vector<8x128xf32>
      %63 = arith.mulf %12, %62 : vector<8x128xf32>
      %c23 = arith.constant 23 : index
      %64 = memref.load %arg1[%c23] : memref<130xf32, #tpu.memory_space<smem>>
      %65 = vector.broadcast %64 : f32 to vector<8x128xf32>
      %66 = arith.addf %63, %65 : vector<8x128xf32>
      %c13 = arith.constant 13 : index
      %67 = memref.load %arg1[%c13] : memref<130xf32, #tpu.memory_space<smem>>
      %68 = vector.broadcast %67 : f32 to vector<8x128xf32>
      %69 = arith.mulf %20, %68 : vector<8x128xf32>
      %70 = arith.addf %66, %69 : vector<8x128xf32>
      %c18 = arith.constant 18 : index
      %71 = memref.load %arg1[%c18] : memref<130xf32, #tpu.memory_space<smem>>
      %72 = vector.broadcast %71 : f32 to vector<8x128xf32>
      %73 = arith.mulf %28, %72 : vector<8x128xf32>
      %74 = arith.addf %70, %73 : vector<8x128xf32>
      %cst_6 = arith.constant 0.000000e+00 : f32
      %75 = vector.broadcast %cst_6 : f32 to vector<8x128xf32>
      %76 = arith.maximumf %74, %75 : vector<8x128xf32>
      %c9 = arith.constant 9 : index
      %77 = memref.load %arg1[%c9] : memref<130xf32, #tpu.memory_space<smem>>
      %78 = vector.broadcast %77 : f32 to vector<8x128xf32>
      %79 = arith.mulf %12, %78 : vector<8x128xf32>
      %c24 = arith.constant 24 : index
      %80 = memref.load %arg1[%c24] : memref<130xf32, #tpu.memory_space<smem>>
      %81 = vector.broadcast %80 : f32 to vector<8x128xf32>
      %82 = arith.addf %79, %81 : vector<8x128xf32>
      %c14 = arith.constant 14 : index
      %83 = memref.load %arg1[%c14] : memref<130xf32, #tpu.memory_space<smem>>
      %84 = vector.broadcast %83 : f32 to vector<8x128xf32>
      %85 = arith.mulf %20, %84 : vector<8x128xf32>
      %86 = arith.addf %82, %85 : vector<8x128xf32>
      %c19 = arith.constant 19 : index
      %87 = memref.load %arg1[%c19] : memref<130xf32, #tpu.memory_space<smem>>
      %88 = vector.broadcast %87 : f32 to vector<8x128xf32>
      %89 = arith.mulf %28, %88 : vector<8x128xf32>
      %90 = arith.addf %86, %89 : vector<8x128xf32>
      %cst_7 = arith.constant 0.000000e+00 : f32
      %91 = vector.broadcast %cst_7 : f32 to vector<8x128xf32>
      %92 = arith.maximumf %90, %91 : vector<8x128xf32>
      %c10 = arith.constant 10 : index
      %93 = memref.load %arg1[%c10] : memref<130xf32, #tpu.memory_space<smem>>
      %94 = vector.broadcast %93 : f32 to vector<8x128xf32>
      %95 = arith.mulf %12, %94 : vector<8x128xf32>
      %c25 = arith.constant 25 : index
      %96 = memref.load %arg1[%c25] : memref<130xf32, #tpu.memory_space<smem>>
      %97 = vector.broadcast %96 : f32 to vector<8x128xf32>
      %98 = arith.addf %95, %97 : vector<8x128xf32>
      %c15 = arith.constant 15 : index
      %99 = memref.load %arg1[%c15] : memref<130xf32, #tpu.memory_space<smem>>
      %100 = vector.broadcast %99 : f32 to vector<8x128xf32>
      %101 = arith.mulf %20, %100 : vector<8x128xf32>
      %102 = arith.addf %98, %101 : vector<8x128xf32>
      %c20 = arith.constant 20 : index
      %103 = memref.load %arg1[%c20] : memref<130xf32, #tpu.memory_space<smem>>
      %104 = vector.broadcast %103 : f32 to vector<8x128xf32>
      %105 = arith.mulf %28, %104 : vector<8x128xf32>
      %106 = arith.addf %102, %105 : vector<8x128xf32>
      %cst_8 = arith.constant 0.000000e+00 : f32
      %107 = vector.broadcast %cst_8 : f32 to vector<8x128xf32>
      %108 = arith.maximumf %106, %107 : vector<8x128xf32>
      %c26 = arith.constant 26 : index
      %109 = memref.load %arg1[%c26] : memref<130xf32, #tpu.memory_space<smem>>
      %110 = vector.broadcast %109 : f32 to vector<8x128xf32>
      %111 = arith.mulf %44, %110 : vector<8x128xf32>
      %c61 = arith.constant 61 : index
      %112 = memref.load %arg1[%c61] : memref<130xf32, #tpu.memory_space<smem>>
      %113 = vector.broadcast %112 : f32 to vector<8x128xf32>
      %114 = arith.addf %111, %113 : vector<8x128xf32>
      %c33 = arith.constant 33 : index
      %115 = memref.load %arg1[%c33] : memref<130xf32, #tpu.memory_space<smem>>
      %116 = vector.broadcast %115 : f32 to vector<8x128xf32>
      %117 = arith.mulf %60, %116 : vector<8x128xf32>
      %118 = arith.addf %114, %117 : vector<8x128xf32>
      %c40 = arith.constant 40 : index
      %119 = memref.load %arg1[%c40] : memref<130xf32, #tpu.memory_space<smem>>
      %120 = vector.broadcast %119 : f32 to vector<8x128xf32>
      %121 = arith.mulf %76, %120 : vector<8x128xf32>
      %122 = arith.addf %118, %121 : vector<8x128xf32>
      %c47 = arith.constant 47 : index
      %123 = memref.load %arg1[%c47] : memref<130xf32, #tpu.memory_space<smem>>
      %124 = vector.broadcast %123 : f32 to vector<8x128xf32>
      %125 = arith.mulf %92, %124 : vector<8x128xf32>
      %126 = arith.addf %122, %125 : vector<8x128xf32>
      %c54 = arith.constant 54 : index
      %127 = memref.load %arg1[%c54] : memref<130xf32, #tpu.memory_space<smem>>
      %128 = vector.broadcast %127 : f32 to vector<8x128xf32>
      %129 = arith.mulf %108, %128 : vector<8x128xf32>
      %130 = arith.addf %126, %129 : vector<8x128xf32>
      %cst_9 = arith.constant 0.000000e+00 : f32
      %131 = vector.broadcast %cst_9 : f32 to vector<8x128xf32>
      %132 = arith.maximumf %130, %131 : vector<8x128xf32>
      %c27 = arith.constant 27 : index
      %133 = memref.load %arg1[%c27] : memref<130xf32, #tpu.memory_space<smem>>
      %134 = vector.broadcast %133 : f32 to vector<8x128xf32>
      %135 = arith.mulf %44, %134 : vector<8x128xf32>
      %c62 = arith.constant 62 : index
      %136 = memref.load %arg1[%c62] : memref<130xf32, #tpu.memory_space<smem>>
      %137 = vector.broadcast %136 : f32 to vector<8x128xf32>
      %138 = arith.addf %135, %137 : vector<8x128xf32>
      %c34 = arith.constant 34 : index
      %139 = memref.load %arg1[%c34] : memref<130xf32, #tpu.memory_space<smem>>
      %140 = vector.broadcast %139 : f32 to vector<8x128xf32>
      %141 = arith.mulf %60, %140 : vector<8x128xf32>
      %142 = arith.addf %138, %141 : vector<8x128xf32>
      %c41 = arith.constant 41 : index
      %143 = memref.load %arg1[%c41] : memref<130xf32, #tpu.memory_space<smem>>
      %144 = vector.broadcast %143 : f32 to vector<8x128xf32>
      %145 = arith.mulf %76, %144 : vector<8x128xf32>
      %146 = arith.addf %142, %145 : vector<8x128xf32>
      %c48 = arith.constant 48 : index
      %147 = memref.load %arg1[%c48] : memref<130xf32, #tpu.memory_space<smem>>
      %148 = vector.broadcast %147 : f32 to vector<8x128xf32>
      %149 = arith.mulf %92, %148 : vector<8x128xf32>
      %150 = arith.addf %146, %149 : vector<8x128xf32>
      %c55 = arith.constant 55 : index
      %151 = memref.load %arg1[%c55] : memref<130xf32, #tpu.memory_space<smem>>
      %152 = vector.broadcast %151 : f32 to vector<8x128xf32>
      %153 = arith.mulf %108, %152 : vector<8x128xf32>
      %154 = arith.addf %150, %153 : vector<8x128xf32>
      %cst_10 = arith.constant 0.000000e+00 : f32
      %155 = vector.broadcast %cst_10 : f32 to vector<8x128xf32>
      %156 = arith.maximumf %154, %155 : vector<8x128xf32>
      %c28 = arith.constant 28 : index
      %157 = memref.load %arg1[%c28] : memref<130xf32, #tpu.memory_space<smem>>
      %158 = vector.broadcast %157 : f32 to vector<8x128xf32>
      %159 = arith.mulf %44, %158 : vector<8x128xf32>
      %c63 = arith.constant 63 : index
      %160 = memref.load %arg1[%c63] : memref<130xf32, #tpu.memory_space<smem>>
      %161 = vector.broadcast %160 : f32 to vector<8x128xf32>
      %162 = arith.addf %159, %161 : vector<8x128xf32>
      %c35 = arith.constant 35 : index
      %163 = memref.load %arg1[%c35] : memref<130xf32, #tpu.memory_space<smem>>
      %164 = vector.broadcast %163 : f32 to vector<8x128xf32>
      %165 = arith.mulf %60, %164 : vector<8x128xf32>
      %166 = arith.addf %162, %165 : vector<8x128xf32>
      %c42 = arith.constant 42 : index
      %167 = memref.load %arg1[%c42] : memref<130xf32, #tpu.memory_space<smem>>
      %168 = vector.broadcast %167 : f32 to vector<8x128xf32>
      %169 = arith.mulf %76, %168 : vector<8x128xf32>
      %170 = arith.addf %166, %169 : vector<8x128xf32>
      %c49 = arith.constant 49 : index
      %171 = memref.load %arg1[%c49] : memref<130xf32, #tpu.memory_space<smem>>
      %172 = vector.broadcast %171 : f32 to vector<8x128xf32>
      %173 = arith.mulf %92, %172 : vector<8x128xf32>
      %174 = arith.addf %170, %173 : vector<8x128xf32>
      %c56 = arith.constant 56 : index
      %175 = memref.load %arg1[%c56] : memref<130xf32, #tpu.memory_space<smem>>
      %176 = vector.broadcast %175 : f32 to vector<8x128xf32>
      %177 = arith.mulf %108, %176 : vector<8x128xf32>
      %178 = arith.addf %174, %177 : vector<8x128xf32>
      %cst_11 = arith.constant 0.000000e+00 : f32
      %179 = vector.broadcast %cst_11 : f32 to vector<8x128xf32>
      %180 = arith.maximumf %178, %179 : vector<8x128xf32>
      %c29 = arith.constant 29 : index
      %181 = memref.load %arg1[%c29] : memref<130xf32, #tpu.memory_space<smem>>
      %182 = vector.broadcast %181 : f32 to vector<8x128xf32>
      %183 = arith.mulf %44, %182 : vector<8x128xf32>
      %c64 = arith.constant 64 : index
      %184 = memref.load %arg1[%c64] : memref<130xf32, #tpu.memory_space<smem>>
      %185 = vector.broadcast %184 : f32 to vector<8x128xf32>
      %186 = arith.addf %183, %185 : vector<8x128xf32>
      %c36 = arith.constant 36 : index
      %187 = memref.load %arg1[%c36] : memref<130xf32, #tpu.memory_space<smem>>
      %188 = vector.broadcast %187 : f32 to vector<8x128xf32>
      %189 = arith.mulf %60, %188 : vector<8x128xf32>
      %190 = arith.addf %186, %189 : vector<8x128xf32>
      %c43 = arith.constant 43 : index
      %191 = memref.load %arg1[%c43] : memref<130xf32, #tpu.memory_space<smem>>
      %192 = vector.broadcast %191 : f32 to vector<8x128xf32>
      %193 = arith.mulf %76, %192 : vector<8x128xf32>
      %194 = arith.addf %190, %193 : vector<8x128xf32>
      %c50 = arith.constant 50 : index
      %195 = memref.load %arg1[%c50] : memref<130xf32, #tpu.memory_space<smem>>
      %196 = vector.broadcast %195 : f32 to vector<8x128xf32>
      %197 = arith.mulf %92, %196 : vector<8x128xf32>
      %198 = arith.addf %194, %197 : vector<8x128xf32>
      %c57 = arith.constant 57 : index
      %199 = memref.load %arg1[%c57] : memref<130xf32, #tpu.memory_space<smem>>
      %200 = vector.broadcast %199 : f32 to vector<8x128xf32>
      %201 = arith.mulf %108, %200 : vector<8x128xf32>
      %202 = arith.addf %198, %201 : vector<8x128xf32>
      %cst_12 = arith.constant 0.000000e+00 : f32
      %203 = vector.broadcast %cst_12 : f32 to vector<8x128xf32>
      %204 = arith.maximumf %202, %203 : vector<8x128xf32>
      %c30 = arith.constant 30 : index
      %205 = memref.load %arg1[%c30] : memref<130xf32, #tpu.memory_space<smem>>
      %206 = vector.broadcast %205 : f32 to vector<8x128xf32>
      %207 = arith.mulf %44, %206 : vector<8x128xf32>
      %c65 = arith.constant 65 : index
      %208 = memref.load %arg1[%c65] : memref<130xf32, #tpu.memory_space<smem>>
      %209 = vector.broadcast %208 : f32 to vector<8x128xf32>
      %210 = arith.addf %207, %209 : vector<8x128xf32>
      %c37 = arith.constant 37 : index
      %211 = memref.load %arg1[%c37] : memref<130xf32, #tpu.memory_space<smem>>
      %212 = vector.broadcast %211 : f32 to vector<8x128xf32>
      %213 = arith.mulf %60, %212 : vector<8x128xf32>
      %214 = arith.addf %210, %213 : vector<8x128xf32>
      %c44 = arith.constant 44 : index
      %215 = memref.load %arg1[%c44] : memref<130xf32, #tpu.memory_space<smem>>
      %216 = vector.broadcast %215 : f32 to vector<8x128xf32>
      %217 = arith.mulf %76, %216 : vector<8x128xf32>
      %218 = arith.addf %214, %217 : vector<8x128xf32>
      %c51 = arith.constant 51 : index
      %219 = memref.load %arg1[%c51] : memref<130xf32, #tpu.memory_space<smem>>
      %220 = vector.broadcast %219 : f32 to vector<8x128xf32>
      %221 = arith.mulf %92, %220 : vector<8x128xf32>
      %222 = arith.addf %218, %221 : vector<8x128xf32>
      %c58 = arith.constant 58 : index
      %223 = memref.load %arg1[%c58] : memref<130xf32, #tpu.memory_space<smem>>
      %224 = vector.broadcast %223 : f32 to vector<8x128xf32>
      %225 = arith.mulf %108, %224 : vector<8x128xf32>
      %226 = arith.addf %222, %225 : vector<8x128xf32>
      %cst_13 = arith.constant 0.000000e+00 : f32
      %227 = vector.broadcast %cst_13 : f32 to vector<8x128xf32>
      %228 = arith.maximumf %226, %227 : vector<8x128xf32>
      %c31 = arith.constant 31 : index
      %229 = memref.load %arg1[%c31] : memref<130xf32, #tpu.memory_space<smem>>
      %230 = vector.broadcast %229 : f32 to vector<8x128xf32>
      %231 = arith.mulf %44, %230 : vector<8x128xf32>
      %c66 = arith.constant 66 : index
      %232 = memref.load %arg1[%c66] : memref<130xf32, #tpu.memory_space<smem>>
      %233 = vector.broadcast %232 : f32 to vector<8x128xf32>
      %234 = arith.addf %231, %233 : vector<8x128xf32>
      %c38 = arith.constant 38 : index
      %235 = memref.load %arg1[%c38] : memref<130xf32, #tpu.memory_space<smem>>
      %236 = vector.broadcast %235 : f32 to vector<8x128xf32>
      %237 = arith.mulf %60, %236 : vector<8x128xf32>
      %238 = arith.addf %234, %237 : vector<8x128xf32>
      %c45 = arith.constant 45 : index
      %239 = memref.load %arg1[%c45] : memref<130xf32, #tpu.memory_space<smem>>
      %240 = vector.broadcast %239 : f32 to vector<8x128xf32>
      %241 = arith.mulf %76, %240 : vector<8x128xf32>
      %242 = arith.addf %238, %241 : vector<8x128xf32>
      %c52 = arith.constant 52 : index
      %243 = memref.load %arg1[%c52] : memref<130xf32, #tpu.memory_space<smem>>
      %244 = vector.broadcast %243 : f32 to vector<8x128xf32>
      %245 = arith.mulf %92, %244 : vector<8x128xf32>
      %246 = arith.addf %242, %245 : vector<8x128xf32>
      %c59 = arith.constant 59 : index
      %247 = memref.load %arg1[%c59] : memref<130xf32, #tpu.memory_space<smem>>
      %248 = vector.broadcast %247 : f32 to vector<8x128xf32>
      %249 = arith.mulf %108, %248 : vector<8x128xf32>
      %250 = arith.addf %246, %249 : vector<8x128xf32>
      %cst_14 = arith.constant 0.000000e+00 : f32
      %251 = vector.broadcast %cst_14 : f32 to vector<8x128xf32>
      %252 = arith.maximumf %250, %251 : vector<8x128xf32>
      %c32 = arith.constant 32 : index
      %253 = memref.load %arg1[%c32] : memref<130xf32, #tpu.memory_space<smem>>
      %254 = vector.broadcast %253 : f32 to vector<8x128xf32>
      %255 = arith.mulf %44, %254 : vector<8x128xf32>
      %c67 = arith.constant 67 : index
      %256 = memref.load %arg1[%c67] : memref<130xf32, #tpu.memory_space<smem>>
      %257 = vector.broadcast %256 : f32 to vector<8x128xf32>
      %258 = arith.addf %255, %257 : vector<8x128xf32>
      %c39 = arith.constant 39 : index
      %259 = memref.load %arg1[%c39] : memref<130xf32, #tpu.memory_space<smem>>
      %260 = vector.broadcast %259 : f32 to vector<8x128xf32>
      %261 = arith.mulf %60, %260 : vector<8x128xf32>
      %262 = arith.addf %258, %261 : vector<8x128xf32>
      %c46 = arith.constant 46 : index
      %263 = memref.load %arg1[%c46] : memref<130xf32, #tpu.memory_space<smem>>
      %264 = vector.broadcast %263 : f32 to vector<8x128xf32>
      %265 = arith.mulf %76, %264 : vector<8x128xf32>
      %266 = arith.addf %262, %265 : vector<8x128xf32>
      %c53 = arith.constant 53 : index
      %267 = memref.load %arg1[%c53] : memref<130xf32, #tpu.memory_space<smem>>
      %268 = vector.broadcast %267 : f32 to vector<8x128xf32>
      %269 = arith.mulf %92, %268 : vector<8x128xf32>
      %270 = arith.addf %266, %269 : vector<8x128xf32>
      %c60 = arith.constant 60 : index
      %271 = memref.load %arg1[%c60] : memref<130xf32, #tpu.memory_space<smem>>
      %272 = vector.broadcast %271 : f32 to vector<8x128xf32>
      %273 = arith.mulf %108, %272 : vector<8x128xf32>
      %274 = arith.addf %270, %273 : vector<8x128xf32>
      %cst_15 = arith.constant 0.000000e+00 : f32
      %275 = vector.broadcast %cst_15 : f32 to vector<8x128xf32>
      %276 = arith.maximumf %274, %275 : vector<8x128xf32>
      %cst_16 = arith.constant 2.000000e+00 : f32
      %277 = vector.broadcast %cst_16 : f32 to vector<8x128xf32>
      %278 = arith.mulf %132, %277 : vector<8x128xf32>
      %279 = math.roundeven %278 : vector<8x128xf32>
      %cst_17 = arith.constant 5.000000e-01 : f32
      %280 = vector.broadcast %cst_17 : f32 to vector<8x128xf32>
      %281 = arith.mulf %279, %280 : vector<8x128xf32>
      %cst_18 = arith.constant 2.000000e+00 : f32
      %282 = vector.broadcast %cst_18 : f32 to vector<8x128xf32>
      %283 = arith.mulf %156, %282 : vector<8x128xf32>
      %284 = math.roundeven %283 : vector<8x128xf32>
      %cst_19 = arith.constant 5.000000e-01 : f32
      %285 = vector.broadcast %cst_19 : f32 to vector<8x128xf32>
      %286 = arith.mulf %284, %285 : vector<8x128xf32>
      %cst_20 = arith.constant 2.000000e+00 : f32
      %287 = vector.broadcast %cst_20 : f32 to vector<8x128xf32>
      %288 = arith.mulf %180, %287 : vector<8x128xf32>
      %289 = math.roundeven %288 : vector<8x128xf32>
      %cst_21 = arith.constant 5.000000e-01 : f32
      %290 = vector.broadcast %cst_21 : f32 to vector<8x128xf32>
      %291 = arith.mulf %289, %290 : vector<8x128xf32>
      %cst_22 = arith.constant 2.000000e+00 : f32
      %292 = vector.broadcast %cst_22 : f32 to vector<8x128xf32>
      %293 = arith.mulf %204, %292 : vector<8x128xf32>
      %294 = math.roundeven %293 : vector<8x128xf32>
      %cst_23 = arith.constant 5.000000e-01 : f32
      %295 = vector.broadcast %cst_23 : f32 to vector<8x128xf32>
      %296 = arith.mulf %294, %295 : vector<8x128xf32>
      %cst_24 = arith.constant 2.000000e+00 : f32
      %297 = vector.broadcast %cst_24 : f32 to vector<8x128xf32>
      %298 = arith.mulf %228, %297 : vector<8x128xf32>
      %299 = math.roundeven %298 : vector<8x128xf32>
      %cst_25 = arith.constant 5.000000e-01 : f32
      %300 = vector.broadcast %cst_25 : f32 to vector<8x128xf32>
      %301 = arith.mulf %299, %300 : vector<8x128xf32>
      %cst_26 = arith.constant 2.000000e+00 : f32
      %302 = vector.broadcast %cst_26 : f32 to vector<8x128xf32>
      %303 = arith.mulf %252, %302 : vector<8x128xf32>
      %304 = math.roundeven %303 : vector<8x128xf32>
      %cst_27 = arith.constant 5.000000e-01 : f32
      %305 = vector.broadcast %cst_27 : f32 to vector<8x128xf32>
      %306 = arith.mulf %304, %305 : vector<8x128xf32>
      %cst_28 = arith.constant 2.000000e+00 : f32
      %307 = vector.broadcast %cst_28 : f32 to vector<8x128xf32>
      %308 = arith.mulf %276, %307 : vector<8x128xf32>
      %309 = math.roundeven %308 : vector<8x128xf32>
      %cst_29 = arith.constant 5.000000e-01 : f32
      %310 = vector.broadcast %cst_29 : f32 to vector<8x128xf32>
      %311 = arith.mulf %309, %310 : vector<8x128xf32>
      %c0_30 = arith.constant 0 : index
      %312 = arith.index_cast %2 : i32 to index
      %c0_31 = arith.constant 0 : index
      %313 = vector.load %arg4[%c0_30, %312, %c0_31] : memref<7x16x128xf32, #tpu.memory_space<vmem>>, vector<1x8x128xf32>
      %314 = vector.shape_cast %313 : vector<1x8x128xf32> to vector<8x128xf32>
      %315 = vector.shape_cast %281 : vector<8x128xf32> to vector<1x8x128xf32>
      tpu.vector_store %arg4[%c0_30, %312, %c0_31], %315 {strides = array<i32>} : memref<7x16x128xf32, #tpu.memory_space<vmem>>, vector<1x8x128xf32>,
      %c1_32 = arith.constant 1 : index
      %316 = arith.index_cast %2 : i32 to index
      %c0_33 = arith.constant 0 : index
      %317 = vector.load %arg4[%c1_32, %316, %c0_33] : memref<7x16x128xf32, #tpu.memory_space<vmem>>, vector<1x8x128xf32>
      %318 = vector.shape_cast %317 : vector<1x8x128xf32> to vector<8x128xf32>
      %319 = vector.shape_cast %286 : vector<8x128xf32> to vector<1x8x128xf32>
      tpu.vector_store %arg4[%c1_32, %316, %c0_33], %319 {strides = array<i32>} : memref<7x16x128xf32, #tpu.memory_space<vmem>>, vector<1x8x128xf32>,
      %c2_34 = arith.constant 2 : index
      %320 = arith.index_cast %2 : i32 to index
      %c0_35 = arith.constant 0 : index
      %321 = vector.load %arg4[%c2_34, %320, %c0_35] : memref<7x16x128xf32, #tpu.memory_space<vmem>>, vector<1x8x128xf32>
      %322 = vector.shape_cast %321 : vector<1x8x128xf32> to vector<8x128xf32>
      %323 = vector.shape_cast %291 : vector<8x128xf32> to vector<1x8x128xf32>
      tpu.vector_store %arg4[%c2_34, %320, %c0_35], %323 {strides = array<i32>} : memref<7x16x128xf32, #tpu.memory_space<vmem>>, vector<1x8x128xf32>,
      %c3_36 = arith.constant 3 : index
      %324 = arith.index_cast %2 : i32 to index
      %c0_37 = arith.constant 0 : index
      %325 = vector.load %arg4[%c3_36, %324, %c0_37] : memref<7x16x128xf32, #tpu.memory_space<vmem>>, vector<1x8x128xf32>
      %326 = vector.shape_cast %325 : vector<1x8x128xf32> to vector<8x128xf32>
      %327 = vector.shape_cast %296 : vector<8x128xf32> to vector<1x8x128xf32>
      tpu.vector_store %arg4[%c3_36, %324, %c0_37], %327 {strides = array<i32>} : memref<7x16x128xf32, #tpu.memory_space<vmem>>, vector<1x8x128xf32>,
      %c4_38 = arith.constant 4 : index
      %328 = arith.index_cast %2 : i32 to index
      %c0_39 = arith.constant 0 : index
      %329 = vector.load %arg4[%c4_38, %328, %c0_39] : memref<7x16x128xf32, #tpu.memory_space<vmem>>, vector<1x8x128xf32>
      %330 = vector.shape_cast %329 : vector<1x8x128xf32> to vector<8x128xf32>
      %331 = vector.shape_cast %301 : vector<8x128xf32> to vector<1x8x128xf32>
      tpu.vector_store %arg4[%c4_38, %328, %c0_39], %331 {strides = array<i32>} : memref<7x16x128xf32, #tpu.memory_space<vmem>>, vector<1x8x128xf32>,
      %c5_40 = arith.constant 5 : index
      %332 = arith.index_cast %2 : i32 to index
      %c0_41 = arith.constant 0 : index
      %333 = vector.load %arg4[%c5_40, %332, %c0_41] : memref<7x16x128xf32, #tpu.memory_space<vmem>>, vector<1x8x128xf32>
      %334 = vector.shape_cast %333 : vector<1x8x128xf32> to vector<8x128xf32>
      %335 = vector.shape_cast %306 : vector<8x128xf32> to vector<1x8x128xf32>
      tpu.vector_store %arg4[%c5_40, %332, %c0_41], %335 {strides = array<i32>} : memref<7x16x128xf32, #tpu.memory_space<vmem>>, vector<1x8x128xf32>,
      %c6_42 = arith.constant 6 : index
      %336 = arith.index_cast %2 : i32 to index
      %c0_43 = arith.constant 0 : index
      %337 = vector.load %arg4[%c6_42, %336, %c0_43] : memref<7x16x128xf32, #tpu.memory_space<vmem>>, vector<1x8x128xf32>
      %338 = vector.shape_cast %337 : vector<1x8x128xf32> to vector<8x128xf32>
      %339 = vector.shape_cast %311 : vector<8x128xf32> to vector<1x8x128xf32>
      tpu.vector_store %arg4[%c6_42, %336, %c0_43], %339 {strides = array<i32>} : memref<7x16x128xf32, #tpu.memory_space<vmem>>, vector<1x8x128xf32>,
      %c68 = arith.constant 68 : index
      %340 = memref.load %arg1[%c68] : memref<130xf32, #tpu.memory_space<smem>>
      %341 = vector.broadcast %340 : f32 to vector<8x128xf32>
      %342 = arith.mulf %281, %341 : vector<8x128xf32>
      %c103 = arith.constant 103 : index
      %343 = memref.load %arg1[%c103] : memref<130xf32, #tpu.memory_space<smem>>
      %344 = vector.broadcast %343 : f32 to vector<8x128xf32>
      %345 = arith.addf %342, %344 : vector<8x128xf32>
      %c73 = arith.constant 73 : index
      %346 = memref.load %arg1[%c73] : memref<130xf32, #tpu.memory_space<smem>>
      %347 = vector.broadcast %346 : f32 to vector<8x128xf32>
      %348 = arith.mulf %286, %347 : vector<8x128xf32>
      %349 = arith.addf %345, %348 : vector<8x128xf32>
      %c78 = arith.constant 78 : index
      %350 = memref.load %arg1[%c78] : memref<130xf32, #tpu.memory_space<smem>>
      %351 = vector.broadcast %350 : f32 to vector<8x128xf32>
      %352 = arith.mulf %291, %351 : vector<8x128xf32>
      %353 = arith.addf %349, %352 : vector<8x128xf32>
      %c83 = arith.constant 83 : index
      %354 = memref.load %arg1[%c83] : memref<130xf32, #tpu.memory_space<smem>>
      %355 = vector.broadcast %354 : f32 to vector<8x128xf32>
      %356 = arith.mulf %296, %355 : vector<8x128xf32>
      %357 = arith.addf %353, %356 : vector<8x128xf32>
      %c88 = arith.constant 88 : index
      %358 = memref.load %arg1[%c88] : memref<130xf32, #tpu.memory_space<smem>>
      %359 = vector.broadcast %358 : f32 to vector<8x128xf32>
      %360 = arith.mulf %301, %359 : vector<8x128xf32>
      %361 = arith.addf %357, %360 : vector<8x128xf32>
      %c93 = arith.constant 93 : index
      %362 = memref.load %arg1[%c93] : memref<130xf32, #tpu.memory_space<smem>>
      %363 = vector.broadcast %362 : f32 to vector<8x128xf32>
      %364 = arith.mulf %306, %363 : vector<8x128xf32>
      %365 = arith.addf %361, %364 : vector<8x128xf32>
      %c98 = arith.constant 98 : index
      %366 = memref.load %arg1[%c98] : memref<130xf32, #tpu.memory_space<smem>>
      %367 = vector.broadcast %366 : f32 to vector<8x128xf32>
      %368 = arith.mulf %311, %367 : vector<8x128xf32>
      %369 = arith.addf %365, %368 : vector<8x128xf32>
      %cst_44 = arith.constant 0.000000e+00 : f32
      %370 = vector.broadcast %cst_44 : f32 to vector<8x128xf32>
      %371 = arith.maximumf %369, %370 : vector<8x128xf32>
      %c69 = arith.constant 69 : index
      %372 = memref.load %arg1[%c69] : memref<130xf32, #tpu.memory_space<smem>>
      %373 = vector.broadcast %372 : f32 to vector<8x128xf32>
      %374 = arith.mulf %281, %373 : vector<8x128xf32>
      %c104 = arith.constant 104 : index
      %375 = memref.load %arg1[%c104] : memref<130xf32, #tpu.memory_space<smem>>
      %376 = vector.broadcast %375 : f32 to vector<8x128xf32>
      %377 = arith.addf %374, %376 : vector<8x128xf32>
      %c74 = arith.constant 74 : index
      %378 = memref.load %arg1[%c74] : memref<130xf32, #tpu.memory_space<smem>>
      %379 = vector.broadcast %378 : f32 to vector<8x128xf32>
      %380 = arith.mulf %286, %379 : vector<8x128xf32>
      %381 = arith.addf %377, %380 : vector<8x128xf32>
      %c79 = arith.constant 79 : index
      %382 = memref.load %arg1[%c79] : memref<130xf32, #tpu.memory_space<smem>>
      %383 = vector.broadcast %382 : f32 to vector<8x128xf32>
      %384 = arith.mulf %291, %383 : vector<8x128xf32>
      %385 = arith.addf %381, %384 : vector<8x128xf32>
      %c84 = arith.constant 84 : index
      %386 = memref.load %arg1[%c84] : memref<130xf32, #tpu.memory_space<smem>>
      %387 = vector.broadcast %386 : f32 to vector<8x128xf32>
      %388 = arith.mulf %296, %387 : vector<8x128xf32>
      %389 = arith.addf %385, %388 : vector<8x128xf32>
      %c89 = arith.constant 89 : index
      %390 = memref.load %arg1[%c89] : memref<130xf32, #tpu.memory_space<smem>>
      %391 = vector.broadcast %390 : f32 to vector<8x128xf32>
      %392 = arith.mulf %301, %391 : vector<8x128xf32>
      %393 = arith.addf %389, %392 : vector<8x128xf32>
      %c94 = arith.constant 94 : index
      %394 = memref.load %arg1[%c94] : memref<130xf32, #tpu.memory_space<smem>>
      %395 = vector.broadcast %394 : f32 to vector<8x128xf32>
      %396 = arith.mulf %306, %395 : vector<8x128xf32>
      %397 = arith.addf %393, %396 : vector<8x128xf32>
      %c99 = arith.constant 99 : index
      %398 = memref.load %arg1[%c99] : memref<130xf32, #tpu.memory_space<smem>>
      %399 = vector.broadcast %398 : f32 to vector<8x128xf32>
      %400 = arith.mulf %311, %399 : vector<8x128xf32>
      %401 = arith.addf %397, %400 : vector<8x128xf32>
      %cst_45 = arith.constant 0.000000e+00 : f32
      %402 = vector.broadcast %cst_45 : f32 to vector<8x128xf32>
      %403 = arith.maximumf %401, %402 : vector<8x128xf32>
      %c70 = arith.constant 70 : index
      %404 = memref.load %arg1[%c70] : memref<130xf32, #tpu.memory_space<smem>>
      %405 = vector.broadcast %404 : f32 to vector<8x128xf32>
      %406 = arith.mulf %281, %405 : vector<8x128xf32>
      %c105 = arith.constant 105 : index
      %407 = memref.load %arg1[%c105] : memref<130xf32, #tpu.memory_space<smem>>
      %408 = vector.broadcast %407 : f32 to vector<8x128xf32>
      %409 = arith.addf %406, %408 : vector<8x128xf32>
      %c75 = arith.constant 75 : index
      %410 = memref.load %arg1[%c75] : memref<130xf32, #tpu.memory_space<smem>>
      %411 = vector.broadcast %410 : f32 to vector<8x128xf32>
      %412 = arith.mulf %286, %411 : vector<8x128xf32>
      %413 = arith.addf %409, %412 : vector<8x128xf32>
      %c80 = arith.constant 80 : index
      %414 = memref.load %arg1[%c80] : memref<130xf32, #tpu.memory_space<smem>>
      %415 = vector.broadcast %414 : f32 to vector<8x128xf32>
      %416 = arith.mulf %291, %415 : vector<8x128xf32>
      %417 = arith.addf %413, %416 : vector<8x128xf32>
      %c85 = arith.constant 85 : index
      %418 = memref.load %arg1[%c85] : memref<130xf32, #tpu.memory_space<smem>>
      %419 = vector.broadcast %418 : f32 to vector<8x128xf32>
      %420 = arith.mulf %296, %419 : vector<8x128xf32>
      %421 = arith.addf %417, %420 : vector<8x128xf32>
      %c90 = arith.constant 90 : index
      %422 = memref.load %arg1[%c90] : memref<130xf32, #tpu.memory_space<smem>>
      %423 = vector.broadcast %422 : f32 to vector<8x128xf32>
      %424 = arith.mulf %301, %423 : vector<8x128xf32>
      %425 = arith.addf %421, %424 : vector<8x128xf32>
      %c95 = arith.constant 95 : index
      %426 = memref.load %arg1[%c95] : memref<130xf32, #tpu.memory_space<smem>>
      %427 = vector.broadcast %426 : f32 to vector<8x128xf32>
      %428 = arith.mulf %306, %427 : vector<8x128xf32>
      %429 = arith.addf %425, %428 : vector<8x128xf32>
      %c100 = arith.constant 100 : index
      %430 = memref.load %arg1[%c100] : memref<130xf32, #tpu.memory_space<smem>>
      %431 = vector.broadcast %430 : f32 to vector<8x128xf32>
      %432 = arith.mulf %311, %431 : vector<8x128xf32>
      %433 = arith.addf %429, %432 : vector<8x128xf32>
      %cst_46 = arith.constant 0.000000e+00 : f32
      %434 = vector.broadcast %cst_46 : f32 to vector<8x128xf32>
      %435 = arith.maximumf %433, %434 : vector<8x128xf32>
      %c71 = arith.constant 71 : index
      %436 = memref.load %arg1[%c71] : memref<130xf32, #tpu.memory_space<smem>>
      %437 = vector.broadcast %436 : f32 to vector<8x128xf32>
      %438 = arith.mulf %281, %437 : vector<8x128xf32>
      %c106 = arith.constant 106 : index
      %439 = memref.load %arg1[%c106] : memref<130xf32, #tpu.memory_space<smem>>
      %440 = vector.broadcast %439 : f32 to vector<8x128xf32>
      %441 = arith.addf %438, %440 : vector<8x128xf32>
      %c76 = arith.constant 76 : index
      %442 = memref.load %arg1[%c76] : memref<130xf32, #tpu.memory_space<smem>>
      %443 = vector.broadcast %442 : f32 to vector<8x128xf32>
      %444 = arith.mulf %286, %443 : vector<8x128xf32>
      %445 = arith.addf %441, %444 : vector<8x128xf32>
      %c81 = arith.constant 81 : index
      %446 = memref.load %arg1[%c81] : memref<130xf32, #tpu.memory_space<smem>>
      %447 = vector.broadcast %446 : f32 to vector<8x128xf32>
      %448 = arith.mulf %291, %447 : vector<8x128xf32>
      %449 = arith.addf %445, %448 : vector<8x128xf32>
      %c86 = arith.constant 86 : index
      %450 = memref.load %arg1[%c86] : memref<130xf32, #tpu.memory_space<smem>>
      %451 = vector.broadcast %450 : f32 to vector<8x128xf32>
      %452 = arith.mulf %296, %451 : vector<8x128xf32>
      %453 = arith.addf %449, %452 : vector<8x128xf32>
      %c91 = arith.constant 91 : index
      %454 = memref.load %arg1[%c91] : memref<130xf32, #tpu.memory_space<smem>>
      %455 = vector.broadcast %454 : f32 to vector<8x128xf32>
      %456 = arith.mulf %301, %455 : vector<8x128xf32>
      %457 = arith.addf %453, %456 : vector<8x128xf32>
      %c96 = arith.constant 96 : index
      %458 = memref.load %arg1[%c96] : memref<130xf32, #tpu.memory_space<smem>>
      %459 = vector.broadcast %458 : f32 to vector<8x128xf32>
      %460 = arith.mulf %306, %459 : vector<8x128xf32>
      %461 = arith.addf %457, %460 : vector<8x128xf32>
      %c101 = arith.constant 101 : index
      %462 = memref.load %arg1[%c101] : memref<130xf32, #tpu.memory_space<smem>>
      %463 = vector.broadcast %462 : f32 to vector<8x128xf32>
      %464 = arith.mulf %311, %463 : vector<8x128xf32>
      %465 = arith.addf %461, %464 : vector<8x128xf32>
      %cst_47 = arith.constant 0.000000e+00 : f32
      %466 = vector.broadcast %cst_47 : f32 to vector<8x128xf32>
      %467 = arith.maximumf %465, %466 : vector<8x128xf32>
      %c72 = arith.constant 72 : index
      %468 = memref.load %arg1[%c72] : memref<130xf32, #tpu.memory_space<smem>>
      %469 = vector.broadcast %468 : f32 to vector<8x128xf32>
      %470 = arith.mulf %281, %469 : vector<8x128xf32>
      %c107 = arith.constant 107 : index
      %471 = memref.load %arg1[%c107] : memref<130xf32, #tpu.memory_space<smem>>
      %472 = vector.broadcast %471 : f32 to vector<8x128xf32>
      %473 = arith.addf %470, %472 : vector<8x128xf32>
      %c77 = arith.constant 77 : index
      %474 = memref.load %arg1[%c77] : memref<130xf32, #tpu.memory_space<smem>>
      %475 = vector.broadcast %474 : f32 to vector<8x128xf32>
      %476 = arith.mulf %286, %475 : vector<8x128xf32>
      %477 = arith.addf %473, %476 : vector<8x128xf32>
      %c82 = arith.constant 82 : index
      %478 = memref.load %arg1[%c82] : memref<130xf32, #tpu.memory_space<smem>>
      %479 = vector.broadcast %478 : f32 to vector<8x128xf32>
      %480 = arith.mulf %291, %479 : vector<8x128xf32>
      %481 = arith.addf %477, %480 : vector<8x128xf32>
      %c87 = arith.constant 87 : index
      %482 = memref.load %arg1[%c87] : memref<130xf32, #tpu.memory_space<smem>>
      %483 = vector.broadcast %482 : f32 to vector<8x128xf32>
      %484 = arith.mulf %296, %483 : vector<8x128xf32>
      %485 = arith.addf %481, %484 : vector<8x128xf32>
      %c92 = arith.constant 92 : index
      %486 = memref.load %arg1[%c92] : memref<130xf32, #tpu.memory_space<smem>>
      %487 = vector.broadcast %486 : f32 to vector<8x128xf32>
      %488 = arith.mulf %301, %487 : vector<8x128xf32>
      %489 = arith.addf %485, %488 : vector<8x128xf32>
      %c97 = arith.constant 97 : index
      %490 = memref.load %arg1[%c97] : memref<130xf32, #tpu.memory_space<smem>>
      %491 = vector.broadcast %490 : f32 to vector<8x128xf32>
      %492 = arith.mulf %306, %491 : vector<8x128xf32>
      %493 = arith.addf %489, %492 : vector<8x128xf32>
      %c102 = arith.constant 102 : index
      %494 = memref.load %arg1[%c102] : memref<130xf32, #tpu.memory_space<smem>>
      %495 = vector.broadcast %494 : f32 to vector<8x128xf32>
      %496 = arith.mulf %311, %495 : vector<8x128xf32>
      %497 = arith.addf %493, %496 : vector<8x128xf32>
      %cst_48 = arith.constant 0.000000e+00 : f32
      %498 = vector.broadcast %cst_48 : f32 to vector<8x128xf32>
      %499 = arith.maximumf %497, %498 : vector<8x128xf32>
      %c108 = arith.constant 108 : index
      %500 = memref.load %arg1[%c108] : memref<130xf32, #tpu.memory_space<smem>>
      %501 = vector.broadcast %500 : f32 to vector<8x128xf32>
      %502 = arith.mulf %371, %501 : vector<8x128xf32>
      %c123 = arith.constant 123 : index
      %503 = memref.load %arg1[%c123] : memref<130xf32, #tpu.memory_space<smem>>
      %504 = vector.broadcast %503 : f32 to vector<8x128xf32>
      %505 = arith.addf %502, %504 : vector<8x128xf32>
      %c111 = arith.constant 111 : index
      %506 = memref.load %arg1[%c111] : memref<130xf32, #tpu.memory_space<smem>>
      %507 = vector.broadcast %506 : f32 to vector<8x128xf32>
      %508 = arith.mulf %403, %507 : vector<8x128xf32>
      %509 = arith.addf %505, %508 : vector<8x128xf32>
      %c114 = arith.constant 114 : index
      %510 = memref.load %arg1[%c114] : memref<130xf32, #tpu.memory_space<smem>>
      %511 = vector.broadcast %510 : f32 to vector<8x128xf32>
      %512 = arith.mulf %435, %511 : vector<8x128xf32>
      %513 = arith.addf %509, %512 : vector<8x128xf32>
      %c117 = arith.constant 117 : index
      %514 = memref.load %arg1[%c117] : memref<130xf32, #tpu.memory_space<smem>>
      %515 = vector.broadcast %514 : f32 to vector<8x128xf32>
      %516 = arith.mulf %467, %515 : vector<8x128xf32>
      %517 = arith.addf %513, %516 : vector<8x128xf32>
      %c120 = arith.constant 120 : index
      %518 = memref.load %arg1[%c120] : memref<130xf32, #tpu.memory_space<smem>>
      %519 = vector.broadcast %518 : f32 to vector<8x128xf32>
      %520 = arith.mulf %499, %519 : vector<8x128xf32>
      %521 = arith.addf %517, %520 : vector<8x128xf32>
      %cst_49 = arith.constant 0.000000e+00 : f32
      %522 = vector.broadcast %cst_49 : f32 to vector<8x128xf32>
      %523 = arith.maximumf %521, %522 : vector<8x128xf32>
      %c109 = arith.constant 109 : index
      %524 = memref.load %arg1[%c109] : memref<130xf32, #tpu.memory_space<smem>>
      %525 = vector.broadcast %524 : f32 to vector<8x128xf32>
      %526 = arith.mulf %371, %525 : vector<8x128xf32>
      %c124 = arith.constant 124 : index
      %527 = memref.load %arg1[%c124] : memref<130xf32, #tpu.memory_space<smem>>
      %528 = vector.broadcast %527 : f32 to vector<8x128xf32>
      %529 = arith.addf %526, %528 : vector<8x128xf32>
      %c112 = arith.constant 112 : index
      %530 = memref.load %arg1[%c112] : memref<130xf32, #tpu.memory_space<smem>>
      %531 = vector.broadcast %530 : f32 to vector<8x128xf32>
      %532 = arith.mulf %403, %531 : vector<8x128xf32>
      %533 = arith.addf %529, %532 : vector<8x128xf32>
      %c115 = arith.constant 115 : index
      %534 = memref.load %arg1[%c115] : memref<130xf32, #tpu.memory_space<smem>>
      %535 = vector.broadcast %534 : f32 to vector<8x128xf32>
      %536 = arith.mulf %435, %535 : vector<8x128xf32>
      %537 = arith.addf %533, %536 : vector<8x128xf32>
      %c118 = arith.constant 118 : index
      %538 = memref.load %arg1[%c118] : memref<130xf32, #tpu.memory_space<smem>>
      %539 = vector.broadcast %538 : f32 to vector<8x128xf32>
      %540 = arith.mulf %467, %539 : vector<8x128xf32>
      %541 = arith.addf %537, %540 : vector<8x128xf32>
      %c121 = arith.constant 121 : index
      %542 = memref.load %arg1[%c121] : memref<130xf32, #tpu.memory_space<smem>>
      %543 = vector.broadcast %542 : f32 to vector<8x128xf32>
      %544 = arith.mulf %499, %543 : vector<8x128xf32>
      %545 = arith.addf %541, %544 : vector<8x128xf32>
      %cst_50 = arith.constant 0.000000e+00 : f32
      %546 = vector.broadcast %cst_50 : f32 to vector<8x128xf32>
      %547 = arith.maximumf %545, %546 : vector<8x128xf32>
      %c110 = arith.constant 110 : index
      %548 = memref.load %arg1[%c110] : memref<130xf32, #tpu.memory_space<smem>>
      %549 = vector.broadcast %548 : f32 to vector<8x128xf32>
      %550 = arith.mulf %371, %549 : vector<8x128xf32>
      %c125 = arith.constant 125 : index
      %551 = memref.load %arg1[%c125] : memref<130xf32, #tpu.memory_space<smem>>
      %552 = vector.broadcast %551 : f32 to vector<8x128xf32>
      %553 = arith.addf %550, %552 : vector<8x128xf32>
      %c113 = arith.constant 113 : index
      %554 = memref.load %arg1[%c113] : memref<130xf32, #tpu.memory_space<smem>>
      %555 = vector.broadcast %554 : f32 to vector<8x128xf32>
      %556 = arith.mulf %403, %555 : vector<8x128xf32>
      %557 = arith.addf %553, %556 : vector<8x128xf32>
      %c116 = arith.constant 116 : index
      %558 = memref.load %arg1[%c116] : memref<130xf32, #tpu.memory_space<smem>>
      %559 = vector.broadcast %558 : f32 to vector<8x128xf32>
      %560 = arith.mulf %435, %559 : vector<8x128xf32>
      %561 = arith.addf %557, %560 : vector<8x128xf32>
      %c119 = arith.constant 119 : index
      %562 = memref.load %arg1[%c119] : memref<130xf32, #tpu.memory_space<smem>>
      %563 = vector.broadcast %562 : f32 to vector<8x128xf32>
      %564 = arith.mulf %467, %563 : vector<8x128xf32>
      %565 = arith.addf %561, %564 : vector<8x128xf32>
      %c122 = arith.constant 122 : index
      %566 = memref.load %arg1[%c122] : memref<130xf32, #tpu.memory_space<smem>>
      %567 = vector.broadcast %566 : f32 to vector<8x128xf32>
      %568 = arith.mulf %499, %567 : vector<8x128xf32>
      %569 = arith.addf %565, %568 : vector<8x128xf32>
      %cst_51 = arith.constant 0.000000e+00 : f32
      %570 = vector.broadcast %cst_51 : f32 to vector<8x128xf32>
      %571 = arith.maximumf %569, %570 : vector<8x128xf32>
      %c126 = arith.constant 126 : index
      %572 = memref.load %arg1[%c126] : memref<130xf32, #tpu.memory_space<smem>>
      %573 = vector.broadcast %572 : f32 to vector<8x128xf32>
      %574 = arith.mulf %523, %573 : vector<8x128xf32>
      %c129 = arith.constant 129 : index
      %575 = memref.load %arg1[%c129] : memref<130xf32, #tpu.memory_space<smem>>
      %576 = vector.broadcast %575 : f32 to vector<8x128xf32>
      %577 = arith.addf %574, %576 : vector<8x128xf32>
      %c127 = arith.constant 127 : index
      %578 = memref.load %arg1[%c127] : memref<130xf32, #tpu.memory_space<smem>>
      %579 = vector.broadcast %578 : f32 to vector<8x128xf32>
      %580 = arith.mulf %547, %579 : vector<8x128xf32>
      %581 = arith.addf %577, %580 : vector<8x128xf32>
      %c128 = arith.constant 128 : index
      %582 = memref.load %arg1[%c128] : memref<130xf32, #tpu.memory_space<smem>>
      %583 = vector.broadcast %582 : f32 to vector<8x128xf32>
      %584 = arith.mulf %571, %583 : vector<8x128xf32>
      %585 = arith.addf %581, %584 : vector<8x128xf32>
      %586 = arith.index_cast %2 : i32 to index
      %c0_52 = arith.constant 0 : index
      %587 = vector.load %arg3[%586, %c0_52] : memref<16x128xf32, #tpu.memory_space<vmem>>, vector<8x128xf32>
      tpu.vector_store %arg3[%586, %c0_52], %585 {strides = array<i32>} : memref<16x128xf32, #tpu.memory_space<vmem>>, vector<8x128xf32>,
    }
    %c2_i32_0 = arith.constant 2 : i32
    return
  }
  func.func @transform_0(%arg0: i32) -> i32 {
    %c0_i32 = arith.constant 0 : i32
    %c0_i32_0 = arith.constant 0 : i32
    return %c0_i32 : i32
  }
  func.func @transform_1(%arg0: i32) -> (i32, i32) {
    %c0_i32 = arith.constant 0 : i32
    %c0_i32_0 = arith.constant 0 : i32
    return %arg0, %c0_i32 : i32, i32
  }
  func.func @transform_2(%arg0: i32) -> (i32, i32) {
    %c0_i32 = arith.constant 0 : i32
    %c0_i32_0 = arith.constant 0 : i32
    return %arg0, %c0_i32 : i32, i32
  }
  func.func @transform_3(%arg0: i32) -> (i32, i32, i32) {
    %c0_i32 = arith.constant 0 : i32
    %c0_i32_0 = arith.constant 0 : i32
    %c0_i32_1 = arith.constant 0 : i32
    return %c0_i32, %arg0, %c0_i32_0 : i32, i32, i32
  }
}

</mosaic_0001>

<llo_original>
// kernel: tpu_custom_call.1
$region0: #{tpu_custom_call.1}
  #allocation0 [shape = 'u32[]', space=smem, size = 0x4, offset = 0x4, fixed_abs, tag = 'smem constant byte address 0x4 - core index']
  #allocation1 [shape = 'u32[144,128]{1,0:T(1,128)}', space=vmem, size = 0x12000, scoped, tag = 'internal scratch']
  %s0 = inlined_call_operand.hbm [shape: f32[130], index: 0, kind: input, shape index: {}]
  %s1 = inlined_call_operand.hbm [shape: f32[16,128], index: 1, kind: input, shape index: {}]
  %s2 = inlined_call_operand.hbm [shape: f32[16,128], index: 2, kind: output, shape index: {0}]
  %s3 = inlined_call_operand.hbm [shape: f32[7,16,128], index: 3, kind: output, shape index: {1}]
  %4 = xla_tuple %s2, %s3
  %s5 = sld [smem:[#allocation0]]
  $region41: #{tpu_custom_call.1} parent=0
    _
  %s7 = ssub.s32 1, %s5
  %s8 = scalar_select 0, %s7, %s5
  $region1: #{tpu_custom_call.1} parent=0
    #allocation2 [shape = 'u8[1024]{0}', space=smem, size = 0x400, scoped, tag = 'input window, operand 0, single buffered']
    #allocation3 [shape = 's32[1]{0}', space=sflag, size = 0x4, scoped, tag = 'scoped memory for tpu_custom_call.1']
    #allocation4 [shape = 's32[1]{0}', space=sflag, size = 0x4, scoped, tag = 'scoped memory for tpu_custom_call.1']
    #allocation5 [shape = 's32[1]{0}', space=sflag, size = 0x4, scoped, tag = 'scoped memory for tpu_custom_call.1']
    #allocation6 [shape = 'u8[8192]{0}', space=vmem, size = 0x2000, scoped, tag = 'input window, operand 1, single buffered']
    #allocation7 [shape = 'u8[8192]{0}', space=vmem, size = 0x2000, scoped, tag = 'output window, operand 0, single buffered']
    #allocation8 [shape = 'u8[57344]{0}', space=vmem, size = 0xe000, scoped, tag = 'output window, operand 1, single buffered']
    #allocation9 [shape = 's32[1]{0}', space=sflag, size = 0x4, scoped, tag = 'scoped memory for tpu_custom_call.1']
    %9 = vsyncpa [#allocation5], 0
    %10 = vsyncpa [#allocation3], 0
    %11 = vsyncpa [#allocation4], 0
    %12 = vsyncpa [#allocation9], 0
    // Predicated region
    $region2: #{tpu_custom_call.1} parent=1 // pred_check
      _
    $region3: #{tpu_custom_call.1} parent=1 // pred_check_branch
      %14 = sbr.rel (0) target = $region5
    $region4: #{tpu_custom_call.1} parent=1 // pred_region
      %s16 = ssub.s32 32, 32
      %17 = vsyncadd [#allocation5], %s16
      %20 = dma.hbm_to_smem %s0, 32, [#allocation2], [#allocation5]
    $region5: #{tpu_custom_call.1} parent=1 // pred_fallthru
      _
    // Predicated region
    $region6: #{tpu_custom_call.1} parent=1 // pred_check
      _
    $region7: #{tpu_custom_call.1} parent=1 // pred_check_branch
      %22 = sbr.rel (0) target = $region9
    $region8: #{tpu_custom_call.1} parent=1 // pred_region
      %s24 = ssub.s32 256, 256
      %25 = vsyncadd [#allocation3], %s24
      %s26 = sshll.u32 [#allocation6], 4
      %s27 = int_to_ptr.vmem [resolvable:$true] %s26
      %32 = dma.hbm_to_vmem [thread:$0]  %s1, 256, %s27, [#allocation3], 128, 128, 8
    $region9: #{tpu_custom_call.1} parent=1 // pred_fallthru
      _
    // Predicated region
    $region10: #{tpu_custom_call.1} parent=1 // pred_check
      _
    $region11: #{tpu_custom_call.1} parent=1 // pred_check_branch
      %34 = sbr.rel (0) target = $region13
    $region12: #{tpu_custom_call.1} parent=1 // pred_region
      %35 = dma.done [#allocation5], 32
    $region13: #{tpu_custom_call.1} parent=1 // pred_fallthru
      _
    // Predicated region
    $region14: #{tpu_custom_call.1} parent=1 // pred_check
      _
    $region15: #{tpu_custom_call.1} parent=1 // pred_check_branch
      %37 = sbr.rel (0) target = $region17
    $region16: #{tpu_custom_call.1} parent=1 // pred_region
      %38 = dma.done [#allocation3], 256
    $region17: #{tpu_custom_call.1} parent=1 // pred_fallthru
      _
    %39 = sfence
    loop: start=0, step=1, limit=2
    $region18: #{tpu_custom_call.1} parent=1 // loop_pre_header
      _
    $region19: #{tpu_custom_call.1} parent=1 // loop_header
      %s41 = sphi 0, %s45
      %p42 = scmp.ge.s32.totalorder %s41, 2
    $region20: #{tpu_custom_call.1} parent=1 // loop_header_branch
      %44 = sbr.rel (%p42) target = $region24
    $region21: #{tpu_custom_call.1} parent=1 // loop_body
      %s46 = smul.u32 %s41, 8
      %s47 = scalar_lea.vmem [#allocation6], %s46
      %v48 = vld [vmem:[%s47] sm:$0xff]
      %s49 = sld [smem:[#allocation2]]
      %v50 = vstv %s49
      %v51 = vmul.f32 %v48, %v50
      %s52 = sld [smem:[#allocation2 + $0x3]]
      %v53 = vstv %s52
      %v54 = vadd.f32 %v51, %v53
      %v55 = vmax.f32 %v54, 0.0
      %s56 = sld [smem:[#allocation2 + $0x1]]
      %v57 = vstv %s56
      %v58 = vmul.f32 %v48, %v57
      %s59 = sld [smem:[#allocation2 + $0x4]]
      %v60 = vstv %s59
      %v61 = vadd.f32 %v58, %v60
      %v62 = vmax.f32 %v61, 0.0
      %s63 = sld [smem:[#allocation2 + $0x2]]
      %v64 = vstv %s63
      %v65 = vmul.f32 %v48, %v64
      %s66 = sld [smem:[#allocation2 + $0x5]]
      %v67 = vstv %s66
      %v68 = vadd.f32 %v65, %v67
      %v69 = vmax.f32 %v68, 0.0
      %s70 = sld [smem:[#allocation2 + $0x6]]
      %v71 = vstv %s70
      %v72 = vmul.f32 %v55, %v71
      %s73 = sld [smem:[#allocation2 + $0x15]]
      %v74 = vstv %s73
      %v75 = vadd.f32 %v72, %v74
      %s76 = sld [smem:[#allocation2 + $0xb]]
      %v77 = vstv %s76
      %v78 = vmul.f32 %v62, %v77
      %v79 = vadd.f32 %v75, %v78
      %s80 = sld [smem:[#allocation2 + $0x10]]
      %v81 = vstv %s80
      %v82 = vmul.f32 %v69, %v81
      %v83 = vadd.f32 %v79, %v82
      %v84 = vmax.f32 %v83, 0.0
      %s85 = sld [smem:[#allocation2 + $0x7]]
      %v86 = vstv %s85
      %v87 = vmul.f32 %v55, %v86
      %s88 = sld [smem:[#allocation2 + $0x16]]
      %v89 = vstv %s88
      %v90 = vadd.f32 %v87, %v89
      %s91 = sld [smem:[#allocation2 + $0xc]]
      %v92 = vstv %s91
      %v93 = vmul.f32 %v62, %v92
      %v94 = vadd.f32 %v90, %v93
      %s95 = sld [smem:[#allocation2 + $0x11]]
      %v96 = vstv %s95
      %v97 = vmul.f32 %v69, %v96
      %v98 = vadd.f32 %v94, %v97
      %v99 = vmax.f32 %v98, 0.0
      %s100 = sld [smem:[#allocation2 + $0x8]]
      %v101 = vstv %s100
      %v102 = vmul.f32 %v55, %v101
      %s103 = sld [smem:[#allocation2 + $0x17]]
      %v104 = vstv %s103
      %v105 = vadd.f32 %v102, %v104
      %s106 = sld [smem:[#allocation2 + $0xd]]
      %v107 = vstv %s106
      %v108 = vmul.f32 %v62, %v107
      %v109 = vadd.f32 %v105, %v108
      %s110 = sld [smem:[#allocation2 + $0x12]]
      %v111 = vstv %s110
      %v112 = vmul.f32 %v69, %v111
      %v113 = vadd.f32 %v109, %v112
      %v114 = vmax.f32 %v113, 0.0
      %s115 = sld [smem:[#allocation2 + $0x9]]
      %v116 = vstv %s115
      %v117 = vmul.f32 %v55, %v116
      %s118 = sld [smem:[#allocation2 + $0x18]]
      %v119 = vstv %s118
      %v120 = vadd.f32 %v117, %v119
      %s121 = sld [smem:[#allocation2 + $0xe]]
      %v122 = vstv %s121
      %v123 = vmul.f32 %v62, %v122
      %v124 = vadd.f32 %v120, %v123
      %s125 = sld [smem:[#allocation2 + $0x13]]
      %v126 = vstv %s125
      %v127 = vmul.f32 %v69, %v126
      %v128 = vadd.f32 %v124, %v127
      %v129 = vmax.f32 %v128, 0.0
      %s130 = sld [smem:[#allocation2 + $0xa]]
      %v131 = vstv %s130
      %v132 = vmul.f32 %v55, %v131
      %s133 = sld [smem:[#allocation2 + $0x19]]
      %v134 = vstv %s133
      %v135 = vadd.f32 %v132, %v134
      %s136 = sld [smem:[#allocation2 + $0xf]]
      %v137 = vstv %s136
      %v138 = vmul.f32 %v62, %v137
      %v139 = vadd.f32 %v135, %v138
      %s140 = sld [smem:[#allocation2 + $0x14]]
      %v141 = vstv %s140
      %v142 = vmul.f32 %v69, %v141
      %v143 = vadd.f32 %v139, %v142
      %v144 = vmax.f32 %v143, 0.0
      %s145 = sld [smem:[#allocation2 + $0x1a]]
      %v146 = vstv %s145
      %v147 = vmul.f32 %v84, %v146
      %s148 = sld [smem:[#allocation2 + $0x3d]]
      %v149 = vstv %s148
      %v150 = vadd.f32 %v147, %v149
      %s151 = sld [smem:[#allocation2 + $0x21]]
      %v152 = vstv %s151
      %v153 = vmul.f32 %v99, %v152
      %v154 = vadd.f32 %v150, %v153
      %s155 = sld [smem:[#allocation2 + $0x28]]
      %v156 = vstv %s155
      %v157 = vmul.f32 %v114, %v156
      %v158 = vadd.f32 %v154, %v157
      %s159 = sld [smem:[#allocation2 + $0x2f]]
      %v160 = vstv %s159
      %v161 = vmul.f32 %v129, %v160
      %v162 = vadd.f32 %v158, %v161
      %s163 = sld [smem:[#allocation2 + $0x36]]
      %v164 = vstv %s163
      %v165 = vmul.f32 %v144, %v164
      %v166 = vadd.f32 %v162, %v165
      %v167 = vmax.f32 %v166, 0.0
      %s168 = sld [smem:[#allocation2 + $0x1b]]
      %v169 = vstv %s168
      %v170 = vmul.f32 %v84, %v169
      %s171 = sld [smem:[#allocation2 + $0x3e]]
      %v172 = vstv %s171
      %v173 = vadd.f32 %v170, %v172
      %s174 = sld [smem:[#allocation2 + $0x22]]
      %v175 = vstv %s174
      %v176 = vmul.f32 %v99, %v175
      %v177 = vadd.f32 %v173, %v176
      %s178 = sld [smem:[#allocation2 + $0x29]]
      %v179 = vstv %s178
      %v180 = vmul.f32 %v114, %v179
      %v181 = vadd.f32 %v177, %v180
      %s182 = sld [smem:[#allocation2 + $0x30]]
      %v183 = vstv %s182
      %v184 = vmul.f32 %v129, %v183
      %v185 = vadd.f32 %v181, %v184
      %s186 = sld [smem:[#allocation2 + $0x37]]
      %v187 = vstv %s186
      %v188 = vmul.f32 %v144, %v187
      %v189 = vadd.f32 %v185, %v188
      %v190 = vmax.f32 %v189, 0.0
      %s191 = sld [smem:[#allocation2 + $0x1c]]
      %v192 = vstv %s191
      %v193 = vmul.f32 %v84, %v192
      %s194 = sld [smem:[#allocation2 + $0x3f]]
      %v195 = vstv %s194
      %v196 = vadd.f32 %v193, %v195
      %s197 = sld [smem:[#allocation2 + $0x23]]
      %v198 = vstv %s197
      %v199 = vmul.f32 %v99, %v198
      %v200 = vadd.f32 %v196, %v199
      %s201 = sld [smem:[#allocation2 + $0x2a]]
      %v202 = vstv %s201
      %v203 = vmul.f32 %v114, %v202
      %v204 = vadd.f32 %v200, %v203
      %s205 = sld [smem:[#allocation2 + $0x31]]
      %v206 = vstv %s205
      %v207 = vmul.f32 %v129, %v206
      %v208 = vadd.f32 %v204, %v207
      %s209 = sld [smem:[#allocation2 + $0x38]]
      %v210 = vstv %s209
      %v211 = vmul.f32 %v144, %v210
      %v212 = vadd.f32 %v208, %v211
      %v213 = vmax.f32 %v212, 0.0
      %s214 = sld [smem:[#allocation2 + $0x1d]]
      %v215 = vstv %s214
      %v216 = vmul.f32 %v84, %v215
      %s217 = sld [smem:[#allocation2 + $0x40]]
      %v218 = vstv %s217
      %v219 = vadd.f32 %v216, %v218
      %s220 = sld [smem:[#allocation2 + $0x24]]
      %v221 = vstv %s220
      %v222 = vmul.f32 %v99, %v221
      %v223 = vadd.f32 %v219, %v222
      %s224 = sld [smem:[#allocation2 + $0x2b]]
      %v225 = vstv %s224
      %v226 = vmul.f32 %v114, %v225
      %v227 = vadd.f32 %v223, %v226
      %s228 = sld [smem:[#allocation2 + $0x32]]
      %v229 = vstv %s228
      %v230 = vmul.f32 %v129, %v229
      %v231 = vadd.f32 %v227, %v230
      %s232 = sld [smem:[#allocation2 + $0x39]]
      %v233 = vstv %s232
      %v234 = vmul.f32 %v144, %v233
      %v235 = vadd.f32 %v231, %v234
      %v236 = vmax.f32 %v235, 0.0
      %s237 = sld [smem:[#allocation2 + $0x1e]]
      %v238 = vstv %s237
      %v239 = vmul.f32 %v84, %v238
      %s240 = sld [smem:[#allocation2 + $0x41]]
      %v241 = vstv %s240
      %v242 = vadd.f32 %v239, %v241
      %s243 = sld [smem:[#allocation2 + $0x25]]
      %v244 = vstv %s243
      %v245 = vmul.f32 %v99, %v244
      %v246 = vadd.f32 %v242, %v245
      %s247 = sld [smem:[#allocation2 + $0x2c]]
      %v248 = vstv %s247
      %v249 = vmul.f32 %v114, %v248
      %v250 = vadd.f32 %v246, %v249
      %s251 = sld [smem:[#allocation2 + $0x33]]
      %v252 = vstv %s251
      %v253 = vmul.f32 %v129, %v252
      %v254 = vadd.f32 %v250, %v253
      %s255 = sld [smem:[#allocation2 + $0x3a]]
      %v256 = vstv %s255
      %v257 = vmul.f32 %v144, %v256
      %v258 = vadd.f32 %v254, %v257
      %v259 = vmax.f32 %v258, 0.0
      %s260 = sld [smem:[#allocation2 + $0x1f]]
      %v261 = vstv %s260
      %v262 = vmul.f32 %v84, %v261
      %s263 = sld [smem:[#allocation2 + $0x42]]
      %v264 = vstv %s263
      %v265 = vadd.f32 %v262, %v264
      %s266 = sld [smem:[#allocation2 + $0x26]]
      %v267 = vstv %s266
      %v268 = vmul.f32 %v99, %v267
      %v269 = vadd.f32 %v265, %v268
      %s270 = sld [smem:[#allocation2 + $0x2d]]
      %v271 = vstv %s270
      %v272 = vmul.f32 %v114, %v271
      %v273 = vadd.f32 %v269, %v272
      %s274 = sld [smem:[#allocation2 + $0x34]]
      %v275 = vstv %s274
      %v276 = vmul.f32 %v129, %v275
      %v277 = vadd.f32 %v273, %v276
      %s278 = sld [smem:[#allocation2 + $0x3b]]
      %v279 = vstv %s278
      %v280 = vmul.f32 %v144, %v279
      %v281 = vadd.f32 %v277, %v280
      %v282 = vmax.f32 %v281, 0.0
      %s283 = sld [smem:[#allocation2 + $0x20]]
      %v284 = vstv %s283
      %v285 = vmul.f32 %v84, %v284
      %s286 = sld [smem:[#allocation2 + $0x43]]
      %v287 = vstv %s286
      %v288 = vadd.f32 %v285, %v287
      %s289 = sld [smem:[#allocation2 + $0x27]]
      %v290 = vstv %s289
      %v291 = vmul.f32 %v99, %v290
      %v292 = vadd.f32 %v288, %v291
      %s293 = sld [smem:[#allocation2 + $0x2e]]
      %v294 = vstv %s293
      %v295 = vmul.f32 %v114, %v294
      %v296 = vadd.f32 %v292, %v295
      %s297 = sld [smem:[#allocation2 + $0x35]]
      %v298 = vstv %s297
      %v299 = vmul.f32 %v129, %v298
      %v300 = vadd.f32 %v296, %v299
      %s301 = sld [smem:[#allocation2 + $0x3c]]
      %v302 = vstv %s301
      %v303 = vmul.f32 %v144, %v302
      %v304 = vadd.f32 %v300, %v303
      %v305 = vmax.f32 %v304, 0.0
      %v306 = vmul.f32 %v167, 2.0
      %v307 = vround.ne.pseudo %v306
      %v308 = vmul.f32 %v307, 0.5
      %v309 = vmul.f32 %v190, 2.0
      %v310 = vround.ne.pseudo %v309
      %v311 = vmul.f32 %v310, 0.5
      %v312 = vmul.f32 %v213, 2.0
      %v313 = vround.ne.pseudo %v312
      %v314 = vmul.f32 %v313, 0.5
      %v315 = vmul.f32 %v236, 2.0
      %v316 = vround.ne.pseudo %v315
      %v317 = vmul.f32 %v316, 0.5
      %v318 = vmul.f32 %v259, 2.0
      %v319 = vround.ne.pseudo %v318
      %v320 = vmul.f32 %v319, 0.5
      %v321 = vmul.f32 %v282, 2.0
      %v322 = vround.ne.pseudo %v321
      %v323 = vmul.f32 %v322, 0.5
      %v324 = vmul.f32 %v305, 2.0
      %v325 = vround.ne.pseudo %v324
      %v326 = vmul.f32 %v325, 0.5
      %s327 = scalar_lea.vmem [#allocation8], %s46
      %328 = vst [vmem:[%s327] sm:$0xff] %v308
      %s329 = sadd.s32 %s46, 16
      %s330 = scalar_lea.vmem [#allocation8], %s329
      %331 = vst [vmem:[%s330] sm:$0xff] %v311
      %s332 = sadd.s32 %s46, 32
      %s333 = scalar_lea.vmem [#allocation8], %s332
      %334 = vst [vmem:[%s333] sm:$0xff] %v314
      %s335 = sadd.s32 %s46, 48
      %s336 = scalar_lea.vmem [#allocation8], %s335
      %337 = vst [vmem:[%s336] sm:$0xff] %v317
      %s338 = sadd.s32 %s46, 64
      %s339 = scalar_lea.vmem [#allocation8], %s338
      %340 = vst [vmem:[%s339] sm:$0xff] %v320
      %s341 = sadd.s32 %s46, 80
      %s342 = scalar_lea.vmem [#allocation8], %s341
      %343 = vst [vmem:[%s342] sm:$0xff] %v323
      %s344 = sadd.s32 %s46, 96
      %s345 = scalar_lea.vmem [#allocation8], %s344
      %346 = vst [vmem:[%s345] sm:$0xff] %v326
      %s347 = sld [smem:[#allocation2 + $0x44]]
      %v348 = vstv %s347
      %v349 = vmul.f32 %v308, %v348
      %s350 = sld [smem:[#allocation2 + $0x67]]
      %v351 = vstv %s350
      %v352 = vadd.f32 %v349, %v351
      %s353 = sld [smem:[#allocation2 + $0x49]]
      %v354 = vstv %s353
      %v355 = vmul.f32 %v311, %v354
      %v356 = vadd.f32 %v352, %v355
      %s357 = sld [smem:[#allocation2 + $0x4e]]
      %v358 = vstv %s357
      %v359 = vmul.f32 %v314, %v358
      %v360 = vadd.f32 %v356, %v359
      %s361 = sld [smem:[#allocation2 + $0x53]]
      %v362 = vstv %s361
      %v363 = vmul.f32 %v317, %v362
      %v364 = vadd.f32 %v360, %v363
      %s365 = sld [smem:[#allocation2 + $0x58]]
      %v366 = vstv %s365
      %v367 = vmul.f32 %v320, %v366
      %v368 = vadd.f32 %v364, %v367
      %s369 = sld [smem:[#allocation2 + $0x5d]]
      %v370 = vstv %s369
      %v371 = vmul.f32 %v323, %v370
      %v372 = vadd.f32 %v368, %v371
      %s373 = sld [smem:[#allocation2 + $0x62]]
      %v374 = vstv %s373
      %v375 = vmul.f32 %v326, %v374
      %v376 = vadd.f32 %v372, %v375
      %v377 = vmax.f32 %v376, 0.0
      %s378 = sld [smem:[#allocation2 + $0x45]]
      %v379 = vstv %s378
      %v380 = vmul.f32 %v308, %v379
      %s381 = sld [smem:[#allocation2 + $0x68]]
      %v382 = vstv %s381
      %v383 = vadd.f32 %v380, %v382
      %s384 = sld [smem:[#allocation2 + $0x4a]]
      %v385 = vstv %s384
      %v386 = vmul.f32 %v311, %v385
      %v387 = vadd.f32 %v383, %v386
      %s388 = sld [smem:[#allocation2 + $0x4f]]
      %v389 = vstv %s388
      %v390 = vmul.f32 %v314, %v389
      %v391 = vadd.f32 %v387, %v390
      %s392 = sld [smem:[#allocation2 + $0x54]]
      %v393 = vstv %s392
      %v394 = vmul.f32 %v317, %v393
      %v395 = vadd.f32 %v391, %v394
      %s396 = sld [smem:[#allocation2 + $0x59]]
      %v397 = vstv %s396
      %v398 = vmul.f32 %v320, %v397
      %v399 = vadd.f32 %v395, %v398
      %s400 = sld [smem:[#allocation2 + $0x5e]]
      %v401 = vstv %s400
      %v402 = vmul.f32 %v323, %v401
      %v403 = vadd.f32 %v399, %v402
      %s404 = sld [smem:[#allocation2 + $0x63]]
      %v405 = vstv %s404
      %v406 = vmul.f32 %v326, %v405
      %v407 = vadd.f32 %v403, %v406
      %v408 = vmax.f32 %v407, 0.0
      %s409 = sld [smem:[#allocation2 + $0x46]]
      %v410 = vstv %s409
      %v411 = vmul.f32 %v308, %v410
      %s412 = sld [smem:[#allocation2 + $0x69]]
      %v413 = vstv %s412
      %v414 = vadd.f32 %v411, %v413
      %s415 = sld [smem:[#allocation2 + $0x4b]]
      %v416 = vstv %s415
      %v417 = vmul.f32 %v311, %v416
      %v418 = vadd.f32 %v414, %v417
      %s419 = sld [smem:[#allocation2 + $0x50]]
      %v420 = vstv %s419
      %v421 = vmul.f32 %v314, %v420
      %v422 = vadd.f32 %v418, %v421
      %s423 = sld [smem:[#allocation2 + $0x55]]
      %v424 = vstv %s423
      %v425 = vmul.f32 %v317, %v424
      %v426 = vadd.f32 %v422, %v425
      %s427 = sld [smem:[#allocation2 + $0x5a]]
      %v428 = vstv %s427
      %v429 = vmul.f32 %v320, %v428
      %v430 = vadd.f32 %v426, %v429
      %s431 = sld [smem:[#allocation2 + $0x5f]]
      %v432 = vstv %s431
      %v433 = vmul.f32 %v323, %v432
      %v434 = vadd.f32 %v430, %v433
      %s435 = sld [smem:[#allocation2 + $0x64]]
      %v436 = vstv %s435
      %v437 = vmul.f32 %v326, %v436
      %v438 = vadd.f32 %v434, %v437
      %v439 = vmax.f32 %v438, 0.0
      %s440 = sld [smem:[#allocation2 + $0x47]]
      %v441 = vstv %s440
      %v442 = vmul.f32 %v308, %v441
      %s443 = sld [smem:[#allocation2 + $0x6a]]
      %v444 = vstv %s443
      %v445 = vadd.f32 %v442, %v444
      %s446 = sld [smem:[#allocation2 + $0x4c]]
      %v447 = vstv %s446
      %v448 = vmul.f32 %v311, %v447
      %v449 = vadd.f32 %v445, %v448
      %s450 = sld [smem:[#allocation2 + $0x51]]
      %v451 = vstv %s450
      %v452 = vmul.f32 %v314, %v451
      %v453 = vadd.f32 %v449, %v452
      %s454 = sld [smem:[#allocation2 + $0x56]]
      %v455 = vstv %s454
      %v456 = vmul.f32 %v317, %v455
      %v457 = vadd.f32 %v453, %v456
      %s458 = sld [smem:[#allocation2 + $0x5b]]
      %v459 = vstv %s458
      %v460 = vmul.f32 %v320, %v459
      %v461 = vadd.f32 %v457, %v460
      %s462 = sld [smem:[#allocation2 + $0x60]]
      %v463 = vstv %s462
      %v464 = vmul.f32 %v323, %v463
      %v465 = vadd.f32 %v461, %v464
      %s466 = sld [smem:[#allocation2 + $0x65]]
      %v467 = vstv %s466
      %v468 = vmul.f32 %v326, %v467
      %v469 = vadd.f32 %v465, %v468
      %v470 = vmax.f32 %v469, 0.0
      %s471 = sld [smem:[#allocation2 + $0x48]]
      %v472 = vstv %s471
      %v473 = vmul.f32 %v308, %v472
      %s474 = sld [smem:[#allocation2 + $0x6b]]
      %v475 = vstv %s474
      %v476 = vadd.f32 %v473, %v475
      %s477 = sld [smem:[#allocation2 + $0x4d]]
      %v478 = vstv %s477
      %v479 = vmul.f32 %v311, %v478
      %v480 = vadd.f32 %v476, %v479
      %s481 = sld [smem:[#allocation2 + $0x52]]
      %v482 = vstv %s481
      %v483 = vmul.f32 %v314, %v482
      %v484 = vadd.f32 %v480, %v483
      %s485 = sld [smem:[#allocation2 + $0x57]]
      %v486 = vstv %s485
      %v487 = vmul.f32 %v317, %v486
      %v488 = vadd.f32 %v484, %v487
      %s489 = sld [smem:[#allocation2 + $0x5c]]
      %v490 = vstv %s489
      %v491 = vmul.f32 %v320, %v490
      %v492 = vadd.f32 %v488, %v491
      %s493 = sld [smem:[#allocation2 + $0x61]]
      %v494 = vstv %s493
      %v495 = vmul.f32 %v323, %v494
      %v496 = vadd.f32 %v492, %v495
      %s497 = sld [smem:[#allocation2 + $0x66]]
      %v498 = vstv %s497
      %v499 = vmul.f32 %v326, %v498
      %v500 = vadd.f32 %v496, %v499
      %v501 = vmax.f32 %v500, 0.0
      %s502 = sld [smem:[#allocation2 + $0x6c]]
      %v503 = vstv %s502
      %v504 = vmul.f32 %v377, %v503
      %s505 = sld [smem:[#allocation2 + $0x7b]]
      %v506 = vstv %s505
      %v507 = vadd.f32 %v504, %v506
      %s508 = sld [smem:[#allocation2 + $0x6f]]
      %v509 = vstv %s508
      %v510 = vmul.f32 %v408, %v509
      %v511 = vadd.f32 %v507, %v510
      %s512 = sld [smem:[#allocation2 + $0x72]]
      %v513 = vstv %s512
      %v514 = vmul.f32 %v439, %v513
      %v515 = vadd.f32 %v511, %v514
      %s516 = sld [smem:[#allocation2 + $0x75]]
      %v517 = vstv %s516
      %v518 = vmul.f32 %v470, %v517
      %v519 = vadd.f32 %v515, %v518
      %s520 = sld [smem:[#allocation2 + $0x78]]
      %v521 = vstv %s520
      %v522 = vmul.f32 %v501, %v521
      %v523 = vadd.f32 %v519, %v522
      %v524 = vmax.f32 %v523, 0.0
      %s525 = sld [smem:[#allocation2 + $0x6d]]
      %v526 = vstv %s525
      %v527 = vmul.f32 %v377, %v526
      %s528 = sld [smem:[#allocation2 + $0x7c]]
      %v529 = vstv %s528
      %v530 = vadd.f32 %v527, %v529
      %s531 = sld [smem:[#allocation2 + $0x70]]
      %v532 = vstv %s531
      %v533 = vmul.f32 %v408, %v532
      %v534 = vadd.f32 %v530, %v533
      %s535 = sld [smem:[#allocation2 + $0x73]]
      %v536 = vstv %s535
      %v537 = vmul.f32 %v439, %v536
      %v538 = vadd.f32 %v534, %v537
      %s539 = sld [smem:[#allocation2 + $0x76]]
      %v540 = vstv %s539
      %v541 = vmul.f32 %v470, %v540
      %v542 = vadd.f32 %v538, %v541
      %s543 = sld [smem:[#allocation2 + $0x79]]
      %v544 = vstv %s543
      %v545 = vmul.f32 %v501, %v544
      %v546 = vadd.f32 %v542, %v545
      %v547 = vmax.f32 %v546, 0.0
      %s548 = sld [smem:[#allocation2 + $0x6e]]
      %v549 = vstv %s548
      %v550 = vmul.f32 %v377, %v549
      %s551 = sld [smem:[#allocation2 + $0x7d]]
      %v552 = vstv %s551
      %v553 = vadd.f32 %v550, %v552
      %s554 = sld [smem:[#allocation2 + $0x71]]
      %v555 = vstv %s554
      %v556 = vmul.f32 %v408, %v555
      %v557 = vadd.f32 %v553, %v556
      %s558 = sld [smem:[#allocation2 + $0x74]]
      %v559 = vstv %s558
      %v560 = vmul.f32 %v439, %v559
      %v561 = vadd.f32 %v557, %v560
      %s562 = sld [smem:[#allocation2 + $0x77]]
      %v563 = vstv %s562
      %v564 = vmul.f32 %v470, %v563
      %v565 = vadd.f32 %v561, %v564
      %s566 = sld [smem:[#allocation2 + $0x7a]]
      %v567 = vstv %s566
      %v568 = vmul.f32 %v501, %v567
      %v569 = vadd.f32 %v565, %v568
      %v570 = vmax.f32 %v569, 0.0
      %s571 = sld [smem:[#allocation2 + $0x7e]]
      %v572 = vstv %s571
      %v573 = vmul.f32 %v524, %v572
      %s574 = sld [smem:[#allocation2 + $0x81]]
      %v575 = vstv %s574
      %v576 = vadd.f32 %v573, %v575
      %s577 = sld [smem:[#allocation2 + $0x7f]]
      %v578 = vstv %s577
      %v579 = vmul.f32 %v547, %v578
      %v580 = vadd.f32 %v576, %v579
      %s581 = sld [smem:[#allocation2 + $0x80]]
      %v582 = vstv %s581
      %v583 = vmul.f32 %v570, %v582
      %v584 = vadd.f32 %v580, %v583
      %s585 = scalar_lea.vmem [#allocation7], %s46
      %586 = vst [vmem:[%s585] sm:$0xff] %v584
    $region22: #{tpu_custom_call.1} parent=1 // loop_footer
      %s45 = sadd.s32 1, %s41
    $region23: #{tpu_custom_call.1} parent=1 // loop_footer_branch
      %40 = sbr.rel target = $region19
    $region24: #{tpu_custom_call.1} parent=1 // loop_exit
      _
    // Predicated region
    $region25: #{tpu_custom_call.1} parent=1 // pred_check
      _
    $region26: #{tpu_custom_call.1} parent=1 // pred_check_branch
      %588 = sbr.rel (0) target = $region28
    $region27: #{tpu_custom_call.1} parent=1 // pred_region
      %s590 = ssub.s32 256, 256
      %591 = vsyncadd [#allocation4], %s590
      %s592 = sshll.u32 [#allocation7], 4
      %s593 = int_to_ptr.vmem [resolvable:$true] %s592
      %598 = dma.vmem_to_hbm [thread:$0]  %s593, 256, %s2, [#allocation4], 128, 128, 8
    $region28: #{tpu_custom_call.1} parent=1 // pred_fallthru
      _
    // Predicated region
    $region29: #{tpu_custom_call.1} parent=1 // pred_check
      _
    $region30: #{tpu_custom_call.1} parent=1 // pred_check_branch
      %600 = sbr.rel (0) target = $region32
    $region31: #{tpu_custom_call.1} parent=1 // pred_region
      %s602 = ssub.s32 1792, 1792
      %603 = vsyncadd [#allocation9], %s602
      %s604 = sshll.u32 [#allocation8], 4
      %s605 = int_to_ptr.vmem [resolvable:$true] %s604
      %610 = dma.vmem_to_hbm [thread:$0]  %s605, 1792, %s3, [#allocation9], 128, 128, 8
    $region32: #{tpu_custom_call.1} parent=1 // pred_fallthru
      _
    // Predicated region
    $region33: #{tpu_custom_call.1} parent=1 // pred_check
      _
    $region34: #{tpu_custom_call.1} parent=1 // pred_check_branch
      %612 = sbr.rel (0) target = $region36
    $region35: #{tpu_custom_call.1} parent=1 // pred_region
      %613 = dma.done [#allocation4], 256
    $region36: #{tpu_custom_call.1} parent=1 // pred_fallthru
      _
    // Predicated region
    $region37: #{tpu_custom_call.1} parent=1 // pred_check
      _
    $region38: #{tpu_custom_call.1} parent=1 // pred_check_branch
      %615 = sbr.rel (0) target = $region40
    $region39: #{tpu_custom_call.1} parent=1 // pred_region
      %616 = dma.done [#allocation9], 1792
    $region40: #{tpu_custom_call.1} parent=1 // pred_fallthru
      _
    %617 = vsyncpa [#allocation3], 1
    %618 = vsyncpa [#allocation4], 1
    %619 = vsyncpa [#allocation9], 1
    %620 = vsyncpa [#allocation5], 1

</llo_original>
